<compile_context>
chip_gen: v7x
topology: tpu7x:2x2x1
jax: 0.10.0
libtpu: 0.0.40
codegen_flags: <defaults>
</compile_context>

<pallas_src>
import functools

import jax
import jax.numpy as jnp
import numpy as np
from jax.experimental import pallas as pl
from jax.experimental.pallas import tpu as pltpu


# ---------------------------------------------------------------------------
# Kernels
# ---------------------------------------------------------------------------
def _truncation_kernel_flat(w_ref, scale_ref, bias_ref, out_ref):
    """3-D latent path: out = w * scale + bias over the whole (TB, L*D) tile."""
    out_ref[...] = w_ref[...] * scale_ref[...] + bias_ref[...]


def _truncation_kernel_bcast(w_ref, scale_ref, bias_ref, out_ref, *,
                             num_layers, d):
    """2-D latent path: (TB, D) input broadcast to (TB, L*D) output.

    Static per-layer loop writing lane-aligned D-wide output slices.  This
    keeps HBM read traffic at 1x and avoids materializing a (TB, L*D) tiled
    intermediate in VMEM (previous jnp.tile version did, breaking the VMEM
    accounting used for tile sizing).
    """
    w = w_ref[...]                                       # (TB, D)
    for r in range(num_layers):                          # static unroll
        lo = r * d
        out_ref[:, lo:lo + d] = (w * scale_ref[:, lo:lo + d]
                                 + bias_ref[:, lo:lo + d])


# ---------------------------------------------------------------------------
# Tiling / VMEM configuration
# ---------------------------------------------------------------------------
def _vmem_config():
    """Generation-aware (budget_bytes, scoped_limit_bytes).

    v5e / v6e have 128 MiB physical VMEM -> large tiles are safe.
    v7x has only 64 MiB -> keep total residency well under ~40 MiB.
    """
    try:
        cap = int(pltpu.get_tpu_info().vmem_capacity_bytes)
    except Exception:
        cap = 64 << 20                      # conservative (v7x-sized) fallback
    if cap >= (96 << 20):                   # v5e / v6e class
        return 56 << 20, 80 << 20
    return 28 << 20, 40 << 20               # v7x class


def _choose_block_rows(n, din, ld, vmem_budget_bytes, max_block_rows):
    """Pick the batch tile (rows per grid step)."""
    if n <= 8:
        return n                            # single block == full array dim

    # Residency: double-buffered input + output blocks, plus scale/bias
    # (counted at worst-case 2 buffers each even though we request 1).
    const_bytes = 2 * 2 * 4 * ld
    row_bytes = 2 * 4 * (din + ld)
    tb = (vmem_budget_bytes - const_bytes) // row_bytes
    tb = max(8, (tb // 8) * 8)
    tb = min(tb, max_block_rows)

    # Guarantee enough grid steps for pipeline overlap and v7x megacore
    # sharding: aim for >= 4 steps whenever the batch allows it.
    min_steps = 4
    tb_split = max(8, ((n // min_steps) // 8) * 8)
    tb = min(tb, tb_split)

    # Prefer an even number of steps (2 TensorCores on v7x).
    steps = -(-n // tb)
    if steps > 1 and steps % 2 == 1:
        tb_alt = max(8, ((-(-n // (steps + 1)) + 7) // 8) * 8)
        if (-(-n // tb_alt)) % 2 == 0:
            tb = tb_alt
    return tb


# ---------------------------------------------------------------------------
# Wrapper
# ---------------------------------------------------------------------------
def truncation_forward(w, w_avg, coefs, num_layers, w_space_dim,
                       *, max_block_rows=2048):
    """Pallas wrapper for TruncationModule.forward.

    w      : (N, w_space_dim) or (N, num_layers, w_space_dim) or
             (N, 1, w_space_dim), float32
    w_avg  : (w_space_dim,), float32
    coefs  : (1, num_layers, 1), float32
    returns: (N, num_layers, w_space_dim), float32
    """
    l, d = int(num_layers), int(w_space_dim)
    ld = l * d

    if w.ndim == 3 and w.shape[1] == 1:
        # (N, 1, D) broadcasts over layers in the reference multiply, which is
        # exactly the 2-D broadcast case.
        w = w.reshape(w.shape[0], w.shape[2])

    if w.ndim == 2:
        if w.shape[1] != d:
            raise ValueError(f"expected last dim {d}, got {w.shape}")
        reps = l
        w_flat = w.astype(jnp.float32)                          # (N, D)
        din = d
    elif w.ndim == 3:
        if w.shape[1] != l or w.shape[2] != d:
            raise ValueError(
                f"expected (N, {l}, {d}) or (N, {d}), got {w.shape}")
        reps = 1
        w_flat = w.astype(jnp.float32).reshape(w.shape[0], ld)  # (N, L*D)
        din = ld
    else:
        raise ValueError(f"w must be 2-D or 3-D, got shape {w.shape}")

    n = w_flat.shape[0]

    # Pre-fuse the affine transform: out = w * scale + bias.
    coefs_ld = jnp.broadcast_to(
        coefs.reshape(l, 1).astype(jnp.float32), (l, d)).reshape(1, ld)
    w_avg_ld = jnp.broadcast_to(
        w_avg.reshape(1, d).astype(jnp.float32), (l, d)).reshape(1, ld)
    scale = coefs_ld
    bias = w_avg_ld * (1.0 - coefs_ld)

    vmem_budget, vmem_limit = _vmem_config()
    tb = _choose_block_rows(n, din, ld, vmem_budget, max_block_rows)
    grid = (pl.cdiv(n, tb),)

    if reps > 1:
        kernel = functools.partial(_truncation_kernel_bcast, num_layers=l, d=d)
    else:
        kernel = _truncation_kernel_flat

    cost = pl.CostEstimate(
        flops=2 * n * ld,
        transcendentals=0,
        bytes_accessed=4 * (n * din + n * ld + 2 * ld),
    )

    def run(const_pipeline_mode):
        if const_pipeline_mode is not None:
            const_spec = pl.BlockSpec((1, ld), lambda i: (0, 0),
                                      pipeline_mode=const_pipeline_mode)
        else:
            const_spec = pl.BlockSpec((1, ld), lambda i: (0, 0))
        fn = pl.pallas_call(
            kernel,
            out_shape=jax.ShapeDtypeStruct((n, ld), jnp.float32),
            grid_spec=pltpu.PrefetchScalarGridSpec(
                num_scalar_prefetch=0,
                grid=grid,
                in_specs=[
                    pl.BlockSpec((tb, din), lambda i: (i, 0)),
                    const_spec,   # scale: grid-invariant VMEM constant
                    const_spec,   # bias : grid-invariant VMEM constant
                ],
                out_specs=pl.BlockSpec((tb, ld), lambda i: (i, 0)),
            ),
            compiler_params=pltpu.CompilerParams(
                dimension_semantics=("parallel",),
                vmem_limit_bytes=vmem_limit,
            ),
            cost_estimate=cost,
        )
        return jax.block_until_ready(fn(w_flat, scale, bias))

    try:
        # Constants never change across grid steps: single-buffer them.
        out_flat = run(pl.Buffered(1))
    except Exception:
        out_flat = run(None)

    return out_flat.reshape(n, l, d)


# ---------------------------------------------------------------------------
# Parameter construction + pure-JAX reference
# ---------------------------------------------------------------------------
def make_truncation_params(resolution, w_space_dim, truncation_psi,
                           truncation_layers, key):
    """Deterministic, in-script parameter/buffer construction (no checkpoint)."""
    num_layers = int(np.log2(resolution)) * 2 - 2
    if truncation_psi is None or truncation_layers is None:
        truncation_psi = 1.0
        truncation_layers = 0

    layer_idx = np.arange(num_layers).reshape(1, num_layers, 1)
    coefs = np.ones_like(layer_idx, dtype=np.float32)
    coefs[layer_idx < truncation_layers] *= truncation_psi
    coefs = jnp.asarray(coefs)

    # NOTE: the PyTorch module registers w_avg as zeros; in practice it is a
    # running average loaded from a checkpoint.  Use a deterministic nonzero
    # value so the (w_avg + ...) path is exercised.
    w_avg = jax.random.normal(key, (w_space_dim,), dtype=jnp.float32) * 0.1
    return num_layers, w_avg, coefs


def reference_forward(w, w_avg, coefs, num_layers, w_space_dim):
    """Pure-JAX reference mirroring the PyTorch forward."""
    if w.ndim == 2:
        w = jnp.broadcast_to(w.reshape(-1, 1, w_space_dim),
                             (w.shape[0], num_layers, w_space_dim))
    w_avg3 = w_avg.reshape(1, 1, w_space_dim)
    return w_avg3 + (w - w_avg3) * coefs


if __name__ == "__main__":
    # Small, module-consistent shapes:
    #   resolution=16 -> num_layers = log2(16)*2 - 2 = 6
    #   w_space_dim=128 (lane-aligned)
    resolution = 16
    w_space_dim = 128
    truncation_psi = 0.7
    truncation_layers = 4
    batch = 2

    key = jax.random.PRNGKey(0)
    k_avg, k_w2, k_w3, k_wb = jax.random.split(key, 4)

    num_layers, w_avg, coefs = make_truncation_params(
        resolution, w_space_dim, truncation_psi, truncation_layers, k_avg)

    # Case 1: 2-D latent codes (N, D), tiny batch -> single-block path.
    w2 = jax.random.normal(k_w2, (batch, w_space_dim), dtype=jnp.float32)
    out2 = truncation_forward(w2, w_avg, coefs, num_layers, w_space_dim)
    ref2 = reference_forward(w2, w_avg, coefs, num_layers, w_space_dim)
    np.testing.assert_allclose(np.asarray(out2), np.asarray(ref2),
                               rtol=1e-5, atol=1e-5)

    # Case 2: 3-D per-layer codes (N, L, D).
    w3 = jax.random.normal(k_w3, (batch, num_layers, w_space_dim),
                           dtype=jnp.float32)
    out3 = truncation_forward(w3, w_avg, coefs, num_layers, w_space_dim)
    ref3 = reference_forward(w3, w_avg, coefs, num_layers, w_space_dim)
    np.testing.assert_allclose(np.asarray(out3), np.asarray(ref3),
                               rtol=1e-5, atol=1e-5)

    # Case 3: 2-D latent codes, larger batch -> multi-block pipelined path
    # (exercises >=4 grid steps and the per-layer broadcast loop).
    big_batch = 64
    wb = jax.random.normal(k_wb, (big_batch, w_space_dim), dtype=jnp.float32)
    outb = truncation_forward(wb, w_avg, coefs, num_layers, w_space_dim)
    refb = reference_forward(wb, w_avg, coefs, num_layers, w_space_dim)
    np.testing.assert_allclose(np.asarray(outb), np.asarray(refb),
                               rtol=1e-5, atol=1e-5)

    assert out2.shape == (batch, num_layers, w_space_dim)
    assert out3.shape == (batch, num_layers, w_space_dim)
    assert outb.shape == (big_batch, num_layers, w_space_dim)
    print("KERNEL_OK")
</pallas_src>

<mosaic_0001>
module attributes {stable_mosaic.version = 11 : i64} {
  func.func @_truncation_kernel_bcast(%arg0: i32, %arg1: memref<2x128xf32, #tpu.memory_space<vmem>>, %arg2: memref<1x768xf32, #tpu.memory_space<vmem>>, %arg3: memref<1x768xf32, #tpu.memory_space<vmem>>, %arg4: memref<2x768xf32, #tpu.memory_space<vmem>>) attributes {dimension_semantics = [#tpu.dimension_semantics<parallel>], iteration_bounds = array<i64: 1>, scalar_prefetch = 0 : i64, scratch_operands = 0 : i64, tpu.core_type = #tpu.core_type<tc>, window_params = [{transform_indices = @transform_0, window_bounds = array<i64: 2, 128>}, {pipeline_mode = #tpu.pipeline_mode<synchronous>, transform_indices = @transform_1, window_bounds = array<i64: 1, 768>}, {pipeline_mode = #tpu.pipeline_mode<synchronous>, transform_indices = @transform_2, window_bounds = array<i64: 1, 768>}, {transform_indices = @transform_3, window_bounds = array<i64: 2, 768>}]} {
    %c0 = arith.constant 0 : index
    %c0_0 = arith.constant 0 : index
    %0 = vector.load %arg1[%c0, %c0_0] : memref<2x128xf32, #tpu.memory_space<vmem>>, vector<2x128xf32>
    %c0_1 = arith.constant 0 : index
    %c0_2 = arith.constant 0 : index
    %1 = vector.load %arg2[%c0_1, %c0_2] : memref<1x768xf32, #tpu.memory_space<vmem>>, vector<1x128xf32>
    %2 = vector.broadcast %1 : vector<1x128xf32> to vector<2x128xf32>
    %3 = arith.mulf %0, %2 : vector<2x128xf32>
    %c0_3 = arith.constant 0 : index
    %c0_4 = arith.constant 0 : index
    %4 = vector.load %arg3[%c0_3, %c0_4] : memref<1x768xf32, #tpu.memory_space<vmem>>, vector<1x128xf32>
    %5 = vector.broadcast %4 : vector<1x128xf32> to vector<2x128xf32>
    %6 = arith.addf %3, %5 : vector<2x128xf32>
    %c0_5 = arith.constant 0 : index
    %c0_6 = arith.constant 0 : index
    %7 = vector.load %arg4[%c0_5, %c0_6] : memref<2x768xf32, #tpu.memory_space<vmem>>, vector<2x128xf32>
    tpu.vector_store %arg4[%c0_5, %c0_6], %6 {strides = array<i32>} : memref<2x768xf32, #tpu.memory_space<vmem>>, vector<2x128xf32>,
    %c0_7 = arith.constant 0 : index
    %c128 = arith.constant 128 : index
    %8 = vector.load %arg2[%c0_7, %c128] : memref<1x768xf32, #tpu.memory_space<vmem>>, vector<1x128xf32>
    %9 = vector.broadcast %8 : vector<1x128xf32> to vector<2x128xf32>
    %10 = arith.mulf %0, %9 : vector<2x128xf32>
    %c0_8 = arith.constant 0 : index
    %c128_9 = arith.constant 128 : index
    %11 = vector.load %arg3[%c0_8, %c128_9] : memref<1x768xf32, #tpu.memory_space<vmem>>, vector<1x128xf32>
    %12 = vector.broadcast %11 : vector<1x128xf32> to vector<2x128xf32>
    %13 = arith.addf %10, %12 : vector<2x128xf32>
    %c0_10 = arith.constant 0 : index
    %c128_11 = arith.constant 128 : index
    %14 = vector.load %arg4[%c0_10, %c128_11] : memref<2x768xf32, #tpu.memory_space<vmem>>, vector<2x128xf32>
    tpu.vector_store %arg4[%c0_10, %c128_11], %13 {strides = array<i32>} : memref<2x768xf32, #tpu.memory_space<vmem>>, vector<2x128xf32>,
    %c0_12 = arith.constant 0 : index
    %c256 = arith.constant 256 : index
    %15 = vector.load %arg2[%c0_12, %c256] : memref<1x768xf32, #tpu.memory_space<vmem>>, vector<1x128xf32>
    %16 = vector.broadcast %15 : vector<1x128xf32> to vector<2x128xf32>
    %17 = arith.mulf %0, %16 : vector<2x128xf32>
    %c0_13 = arith.constant 0 : index
    %c256_14 = arith.constant 256 : index
    %18 = vector.load %arg3[%c0_13, %c256_14] : memref<1x768xf32, #tpu.memory_space<vmem>>, vector<1x128xf32>
    %19 = vector.broadcast %18 : vector<1x128xf32> to vector<2x128xf32>
    %20 = arith.addf %17, %19 : vector<2x128xf32>
    %c0_15 = arith.constant 0 : index
    %c256_16 = arith.constant 256 : index
    %21 = vector.load %arg4[%c0_15, %c256_16] : memref<2x768xf32, #tpu.memory_space<vmem>>, vector<2x128xf32>
    tpu.vector_store %arg4[%c0_15, %c256_16], %20 {strides = array<i32>} : memref<2x768xf32, #tpu.memory_space<vmem>>, vector<2x128xf32>,
    %c0_17 = arith.constant 0 : index
    %c384 = arith.constant 384 : index
    %22 = vector.load %arg2[%c0_17, %c384] : memref<1x768xf32, #tpu.memory_space<vmem>>, vector<1x128xf32>
    %23 = vector.broadcast %22 : vector<1x128xf32> to vector<2x128xf32>
    %24 = arith.mulf %0, %23 : vector<2x128xf32>
    %c0_18 = arith.constant 0 : index
    %c384_19 = arith.constant 384 : index
    %25 = vector.load %arg3[%c0_18, %c384_19] : memref<1x768xf32, #tpu.memory_space<vmem>>, vector<1x128xf32>
    %26 = vector.broadcast %25 : vector<1x128xf32> to vector<2x128xf32>
    %27 = arith.addf %24, %26 : vector<2x128xf32>
    %c0_20 = arith.constant 0 : index
    %c384_21 = arith.constant 384 : index
    %28 = vector.load %arg4[%c0_20, %c384_21] : memref<2x768xf32, #tpu.memory_space<vmem>>, vector<2x128xf32>
    tpu.vector_store %arg4[%c0_20, %c384_21], %27 {strides = array<i32>} : memref<2x768xf32, #tpu.memory_space<vmem>>, vector<2x128xf32>,
    %c0_22 = arith.constant 0 : index
    %c512 = arith.constant 512 : index
    %29 = vector.load %arg2[%c0_22, %c512] : memref<1x768xf32, #tpu.memory_space<vmem>>, vector<1x128xf32>
    %30 = vector.broadcast %29 : vector<1x128xf32> to vector<2x128xf32>
    %31 = arith.mulf %0, %30 : vector<2x128xf32>
    %c0_23 = arith.constant 0 : index
    %c512_24 = arith.constant 512 : index
    %32 = vector.load %arg3[%c0_23, %c512_24] : memref<1x768xf32, #tpu.memory_space<vmem>>, vector<1x128xf32>
    %33 = vector.broadcast %32 : vector<1x128xf32> to vector<2x128xf32>
    %34 = arith.addf %31, %33 : vector<2x128xf32>
    %c0_25 = arith.constant 0 : index
    %c512_26 = arith.constant 512 : index
    %35 = vector.load %arg4[%c0_25, %c512_26] : memref<2x768xf32, #tpu.memory_space<vmem>>, vector<2x128xf32>
    tpu.vector_store %arg4[%c0_25, %c512_26], %34 {strides = array<i32>} : memref<2x768xf32, #tpu.memory_space<vmem>>, vector<2x128xf32>,
    %c0_27 = arith.constant 0 : index
    %c640 = arith.constant 640 : index
    %36 = vector.load %arg2[%c0_27, %c640] : memref<1x768xf32, #tpu.memory_space<vmem>>, vector<1x128xf32>
    %37 = vector.broadcast %36 : vector<1x128xf32> to vector<2x128xf32>
    %38 = arith.mulf %0, %37 : vector<2x128xf32>
    %c0_28 = arith.constant 0 : index
    %c640_29 = arith.constant 640 : index
    %39 = vector.load %arg3[%c0_28, %c640_29] : memref<1x768xf32, #tpu.memory_space<vmem>>, vector<1x128xf32>
    %40 = vector.broadcast %39 : vector<1x128xf32> to vector<2x128xf32>
    %41 = arith.addf %38, %40 : vector<2x128xf32>
    %c0_30 = arith.constant 0 : index
    %c640_31 = arith.constant 640 : index
    %42 = vector.load %arg4[%c0_30, %c640_31] : memref<2x768xf32, #tpu.memory_space<vmem>>, vector<2x128xf32>
    tpu.vector_store %arg4[%c0_30, %c640_31], %41 {strides = array<i32>} : memref<2x768xf32, #tpu.memory_space<vmem>>, vector<2x128xf32>,
    return
  }
  func.func @transform_0(%arg0: i32) -> (i32, i32) {
    %c0_i32 = arith.constant 0 : i32
    %c0_i32_0 = arith.constant 0 : i32
    return %arg0, %c0_i32 : i32, i32
  }
  func.func @transform_1(%arg0: i32) -> (i32, i32) {
    %c0_i32 = arith.constant 0 : i32
    %c0_i32_0 = arith.constant 0 : i32
    %c0_i32_1 = arith.constant 0 : i32
    return %c0_i32, %c0_i32_0 : i32, i32
  }
  func.func @transform_2(%arg0: i32) -> (i32, i32) {
    %c0_i32 = arith.constant 0 : i32
    %c0_i32_0 = arith.constant 0 : i32
    %c0_i32_1 = arith.constant 0 : i32
    return %c0_i32, %c0_i32_0 : i32, i32
  }
  func.func @transform_3(%arg0: i32) -> (i32, i32) {
    %c0_i32 = arith.constant 0 : i32
    %c0_i32_0 = arith.constant 0 : i32
    return %arg0, %c0_i32 : i32, i32
  }
}

module attributes {stable_mosaic.version = 11 : i64} {
  func.func @_truncation_kernel_bcast(%arg0: i32, %arg1: memref<2x128xf32, #tpu.memory_space<vmem>>, %arg2: memref<1x768xf32, #tpu.memory_space<vmem>>, %arg3: memref<1x768xf32, #tpu.memory_space<vmem>>, %arg4: memref<2x768xf32, #tpu.memory_space<vmem>>) attributes {dimension_semantics = [#tpu.dimension_semantics<parallel>], iteration_bounds = array<i64: 1>, scalar_prefetch = 0 : i64, scratch_operands = 0 : i64, tpu.core_type = #tpu.core_type<tc>, window_params = [{transform_indices = @transform_0, window_bounds = array<i64: 2, 128>}, {pipeline_mode = #tpu.pipeline_mode<synchronous>, transform_indices = @transform_1, window_bounds = array<i64: 1, 768>}, {pipeline_mode = #tpu.pipeline_mode<synchronous>, transform_indices = @transform_2, window_bounds = array<i64: 1, 768>}, {transform_indices = @transform_3, window_bounds = array<i64: 2, 768>}]} {
    %c0 = arith.constant 0 : index
    %c0_0 = arith.constant 0 : index
    %0 = vector.load %arg1[%c0, %c0_0] : memref<2x128xf32, #tpu.memory_space<vmem>>, vector<2x128xf32>
    %c0_1 = arith.constant 0 : index
    %c0_2 = arith.constant 0 : index
    %1 = vector.load %arg2[%c0_1, %c0_2] : memref<1x768xf32, #tpu.memory_space<vmem>>, vector<1x128xf32>
    %2 = vector.broadcast %1 : vector<1x128xf32> to vector<2x128xf32>
    %3 = arith.mulf %0, %2 : vector<2x128xf32>
    %c0_3 = arith.constant 0 : index
    %c0_4 = arith.constant 0 : index
    %4 = vector.load %arg3[%c0_3, %c0_4] : memref<1x768xf32, #tpu.memory_space<vmem>>, vector<1x128xf32>
    %5 = vector.broadcast %4 : vector<1x128xf32> to vector<2x128xf32>
    %6 = arith.addf %3, %5 : vector<2x128xf32>
    %c0_5 = arith.constant 0 : index
    %c0_6 = arith.constant 0 : index
    %7 = vector.load %arg4[%c0_5, %c0_6] : memref<2x768xf32, #tpu.memory_space<vmem>>, vector<2x128xf32>
    tpu.vector_store %arg4[%c0_5, %c0_6], %6 {strides = array<i32>} : memref<2x768xf32, #tpu.memory_space<vmem>>, vector<2x128xf32>,
    %c0_7 = arith.constant 0 : index
    %c128 = arith.constant 128 : index
    %8 = vector.load %arg2[%c0_7, %c128] : memref<1x768xf32, #tpu.memory_space<vmem>>, vector<1x128xf32>
    %9 = vector.broadcast %8 : vector<1x128xf32> to vector<2x128xf32>
    %10 = arith.mulf %0, %9 : vector<2x128xf32>
    %c0_8 = arith.constant 0 : index
    %c128_9 = arith.constant 128 : index
    %11 = vector.load %arg3[%c0_8, %c128_9] : memref<1x768xf32, #tpu.memory_space<vmem>>, vector<1x128xf32>
    %12 = vector.broadcast %11 : vector<1x128xf32> to vector<2x128xf32>
    %13 = arith.addf %10, %12 : vector<2x128xf32>
    %c0_10 = arith.constant 0 : index
    %c128_11 = arith.constant 128 : index
    %14 = vector.load %arg4[%c0_10, %c128_11] : memref<2x768xf32, #tpu.memory_space<vmem>>, vector<2x128xf32>
    tpu.vector_store %arg4[%c0_10, %c128_11], %13 {strides = array<i32>} : memref<2x768xf32, #tpu.memory_space<vmem>>, vector<2x128xf32>,
    %c0_12 = arith.constant 0 : index
    %c256 = arith.constant 256 : index
    %15 = vector.load %arg2[%c0_12, %c256] : memref<1x768xf32, #tpu.memory_space<vmem>>, vector<1x128xf32>
    %16 = vector.broadcast %15 : vector<1x128xf32> to vector<2x128xf32>
    %17 = arith.mulf %0, %16 : vector<2x128xf32>
    %c0_13 = arith.constant 0 : index
    %c256_14 = arith.constant 256 : index
    %18 = vector.load %arg3[%c0_13, %c256_14] : memref<1x768xf32, #tpu.memory_space<vmem>>, vector<1x128xf32>
    %19 = vector.broadcast %18 : vector<1x128xf32> to vector<2x128xf32>
    %20 = arith.addf %17, %19 : vector<2x128xf32>
    %c0_15 = arith.constant 0 : index
    %c256_16 = arith.constant 256 : index
    %21 = vector.load %arg4[%c0_15, %c256_16] : memref<2x768xf32, #tpu.memory_space<vmem>>, vector<2x128xf32>
    tpu.vector_store %arg4[%c0_15, %c256_16], %20 {strides = array<i32>} : memref<2x768xf32, #tpu.memory_space<vmem>>, vector<2x128xf32>,
    %c0_17 = arith.constant 0 : index
    %c384 = arith.constant 384 : index
    %22 = vector.load %arg2[%c0_17, %c384] : memref<1x768xf32, #tpu.memory_space<vmem>>, vector<1x128xf32>
    %23 = vector.broadcast %22 : vector<1x128xf32> to vector<2x128xf32>
    %24 = arith.mulf %0, %23 : vector<2x128xf32>
    %c0_18 = arith.constant 0 : index
    %c384_19 = arith.constant 384 : index
    %25 = vector.load %arg3[%c0_18, %c384_19] : memref<1x768xf32, #tpu.memory_space<vmem>>, vector<1x128xf32>
    %26 = vector.broadcast %25 : vector<1x128xf32> to vector<2x128xf32>
    %27 = arith.addf %24, %26 : vector<2x128xf32>
    %c0_20 = arith.constant 0 : index
    %c384_21 = arith.constant 384 : index
    %28 = vector.load %arg4[%c0_20, %c384_21] : memref<2x768xf32, #tpu.memory_space<vmem>>, vector<2x128xf32>
    tpu.vector_store %arg4[%c0_20, %c384_21], %27 {strides = array<i32>} : memref<2x768xf32, #tpu.memory_space<vmem>>, vector<2x128xf32>,
    %c0_22 = arith.constant 0 : index
    %c512 = arith.constant 512 : index
    %29 = vector.load %arg2[%c0_22, %c512] : memref<1x768xf32, #tpu.memory_space<vmem>>, vector<1x128xf32>
    %30 = vector.broadcast %29 : vector<1x128xf32> to vector<2x128xf32>
    %31 = arith.mulf %0, %30 : vector<2x128xf32>
    %c0_23 = arith.constant 0 : index
    %c512_24 = arith.constant 512 : index
    %32 = vector.load %arg3[%c0_23, %c512_24] : memref<1x768xf32, #tpu.memory_space<vmem>>, vector<1x128xf32>
    %33 = vector.broadcast %32 : vector<1x128xf32> to vector<2x128xf32>
    %34 = arith.addf %31, %33 : vector<2x128xf32>
    %c0_25 = arith.constant 0 : index
    %c512_26 = arith.constant 512 : index
    %35 = vector.load %arg4[%c0_25, %c512_26] : memref<2x768xf32, #tpu.memory_space<vmem>>, vector<2x128xf32>
    tpu.vector_store %arg4[%c0_25, %c512_26], %34 {strides = array<i32>} : memref<2x768xf32, #tpu.memory_space<vmem>>, vector<2x128xf32>,
    %c0_27 = arith.constant 0 : index
    %c640 = arith.constant 640 : index
    %36 = vector.load %arg2[%c0_27, %c640] : memref<1x768xf32, #tpu.memory_space<vmem>>, vector<1x128xf32>
    %37 = vector.broadcast %36 : vector<1x128xf32> to vector<2x128xf32>
    %38 = arith.mulf %0, %37 : vector<2x128xf32>
    %c0_28 = arith.constant 0 : index
    %c640_29 = arith.constant 640 : index
    %39 = vector.load %arg3[%c0_28, %c640_29] : memref<1x768xf32, #tpu.memory_space<vmem>>, vector<1x128xf32>
    %40 = vector.broadcast %39 : vector<1x128xf32> to vector<2x128xf32>
    %41 = arith.addf %38, %40 : vector<2x128xf32>
    %c0_30 = arith.constant 0 : index
    %c640_31 = arith.constant 640 : index
    %42 = vector.load %arg4[%c0_30, %c640_31] : memref<2x768xf32, #tpu.memory_space<vmem>>, vector<2x128xf32>
    tpu.vector_store %arg4[%c0_30, %c640_31], %41 {strides = array<i32>} : memref<2x768xf32, #tpu.memory_space<vmem>>, vector<2x128xf32>,
    return
  }
  func.func @transform_0(%arg0: i32) -> (i32, i32) {
    %c0_i32 = arith.constant 0 : i32
    %c0_i32_0 = arith.constant 0 : i32
    return %arg0, %c0_i32 : i32, i32
  }
  func.func @transform_1(%arg0: i32) -> (i32, i32) {
    %c0_i32 = arith.constant 0 : i32
    %c0_i32_0 = arith.constant 0 : i32
    %c0_i32_1 = arith.constant 0 : i32
    return %c0_i32, %c0_i32_0 : i32, i32
  }
  func.func @transform_2(%arg0: i32) -> (i32, i32) {
    %c0_i32 = arith.constant 0 : i32
    %c0_i32_0 = arith.constant 0 : i32
    %c0_i32_1 = arith.constant 0 : i32
    return %c0_i32, %c0_i32_0 : i32, i32
  }
  func.func @transform_3(%arg0: i32) -> (i32, i32) {
    %c0_i32 = arith.constant 0 : i32
    %c0_i32_0 = arith.constant 0 : i32
    return %arg0, %c0_i32 : i32, i32
  }
}

</mosaic_0001>

<llo_original>
// kernel: tpu_custom_call.1
$region0: #{tpu_custom_call.1}
  #allocation0 [shape = 'u32[]', space=smem, size = 0x4, offset = 0x4, fixed_abs, tag = 'smem constant byte address 0x4 - core index']
  #allocation1 [shape = 'u32[144,128]{1,0:T(1,128)}', space=vmem, size = 0x12000, scoped, tag = 'internal scratch']
  %s0 = inlined_call_operand.hbm [shape: f32[2,128], index: 0, kind: input, shape index: {}]
  %s1 = inlined_call_operand.hbm [shape: f32[1,768], index: 1, kind: input, shape index: {}]
  %s2 = inlined_call_operand.vmem [shape: f32[1,768], index: 2, kind: input, shape index: {}]
  %s3 = inlined_call_operand.hbm [shape: f32[2,768], index: 3, kind: output, shape index: {}]
  %s4 = sld [smem:[#allocation0]]
  $region30: #{tpu_custom_call.1} parent=0
    _
  %s6 = ssub.s32 1, %s4
  %s7 = scalar_select 0, %s6, %s4
  $region1: #{tpu_custom_call.1} parent=0
    #allocation2 [shape = 'u8[1024]{0}', space=vmem, size = 0x400, scoped, tag = 'input window, operand 0, single buffered']
    #allocation3 [shape = 's32[1]{0}', space=sflag, size = 0x4, scoped, tag = 'scoped memory for tpu_custom_call.1']
    #allocation4 [shape = 's32[1]{0}', space=sflag, size = 0x4, scoped, tag = 'scoped memory for tpu_custom_call.1']
    #allocation5 [shape = 'u8[3072]{0}', space=vmem, size = 0xc00, scoped, tag = 'input window, operand 1, single buffered']
    #allocation6 [shape = 's32[1]{0}', space=sflag, size = 0x4, scoped, tag = 'scoped memory for tpu_custom_call.1']
    #allocation7 [shape = 'u8[6144]{0}', space=vmem, size = 0x1800, scoped, tag = 'output window, operand 0, single buffered']
    %8 = vsyncpa [#allocation3], 0
    %9 = vsyncpa [#allocation6], 0
    %10 = vsyncpa [#allocation4], 0
    // Predicated region
    $region2: #{tpu_custom_call.1} parent=1 // pred_check
      _
    $region3: #{tpu_custom_call.1} parent=1 // pred_check_branch
      %12 = sbr.rel (0) target = $region5
    $region4: #{tpu_custom_call.1} parent=1 // pred_region
      %s14 = ssub.s32 32, 32
      %15 = vsyncadd [#allocation3], %s14
      %s17 = sshll.u32 [#allocation2], 4
      %s18 = int_to_ptr.vmem [resolvable:$true] %s17
      %20 = dma.hbm_to_vmem [thread:$0]  %s0, 32, %s18, [#allocation3]
    $region5: #{tpu_custom_call.1} parent=1 // pred_fallthru
      _
    // Predicated region
    $region6: #{tpu_custom_call.1} parent=1 // pred_check
      _
    $region7: #{tpu_custom_call.1} parent=1 // pred_check_branch
      %22 = sbr.rel (0) target = $region9
    $region8: #{tpu_custom_call.1} parent=1 // pred_region
      %s24 = ssub.s32 96, 96
      %25 = vsyncadd [#allocation6], %s24
      %s27 = sshll.u32 [#allocation5], 4
      %s28 = int_to_ptr.vmem [resolvable:$true] %s27
      %30 = dma.hbm_to_vmem [thread:$0]  %s1, 96, %s28, [#allocation6]
    $region9: #{tpu_custom_call.1} parent=1 // pred_fallthru
      _
    // Predicated region
    $region10: #{tpu_custom_call.1} parent=1 // pred_check
      _
    $region11: #{tpu_custom_call.1} parent=1 // pred_check_branch
      %32 = sbr.rel (0) target = $region13
    $region12: #{tpu_custom_call.1} parent=1 // pred_region
      _
    $region13: #{tpu_custom_call.1} parent=1 // pred_fallthru
      _
    // Predicated region
    $region14: #{tpu_custom_call.1} parent=1 // pred_check
      _
    $region15: #{tpu_custom_call.1} parent=1 // pred_check_branch
      %34 = sbr.rel (0) target = $region17
    $region16: #{tpu_custom_call.1} parent=1 // pred_region
      %35 = dma.done [#allocation3], 32
    $region17: #{tpu_custom_call.1} parent=1 // pred_fallthru
      _
    // Predicated region
    $region18: #{tpu_custom_call.1} parent=1 // pred_check
      _
    $region19: #{tpu_custom_call.1} parent=1 // pred_check_branch
      %37 = sbr.rel (0) target = $region21
    $region20: #{tpu_custom_call.1} parent=1 // pred_region
      %38 = dma.done [#allocation6], 96
    $region21: #{tpu_custom_call.1} parent=1 // pred_fallthru
      _
    %v39 = vld [vmem:[#allocation2] sm:$0x3]
    %v40 = vld [vmem:[#allocation5] sm:$0x1]
    %v42 = vlaneseq
    %v43 = vshrl.u32 %v42, 7
    %v44 = vsub.s32 0, %v43
    %v45 = vrot.slane %v40, %v44
    %v47 = vmul.f32 %v39, %v45
    %v48 = vld [vmem:[%s2] sm:$0x1]
    %v50 = vlaneseq
    %v51 = vshrl.u32 %v50, 7
    %v52 = vsub.s32 0, %v51
    %v53 = vrot.slane %v48, %v52
    %v55 = vadd.f32 %v47, %v53
    %56 = vst [vmem:[#allocation7] sm:$0x3] %v55
    %v57 = vld [vmem:[#allocation5 + $0x1] sm:$0x1]
    %v59 = vlaneseq
    %v60 = vshrl.u32 %v59, 7
    %v61 = vsub.s32 0, %v60
    %v62 = vrot.slane %v57, %v61
    %v64 = vmul.f32 %v39, %v62
    %v65 = vld [vmem:[%s2 + $0x1] sm:$0x1]
    %v67 = vlaneseq
    %v68 = vshrl.u32 %v67, 7
    %v69 = vsub.s32 0, %v68
    %v70 = vrot.slane %v65, %v69
    %v72 = vadd.f32 %v64, %v70
    %73 = vst [vmem:[#allocation7 + $0x2] sm:$0x3] %v72
    %v74 = vld [vmem:[#allocation5 + $0x2] sm:$0x1]
    %v76 = vlaneseq
    %v77 = vshrl.u32 %v76, 7
    %v78 = vsub.s32 0, %v77
    %v79 = vrot.slane %v74, %v78
    %v81 = vmul.f32 %v39, %v79
    %v82 = vld [vmem:[%s2 + $0x2] sm:$0x1]
    %v84 = vlaneseq
    %v85 = vshrl.u32 %v84, 7
    %v86 = vsub.s32 0, %v85
    %v87 = vrot.slane %v82, %v86
    %v89 = vadd.f32 %v81, %v87
    %90 = vst [vmem:[#allocation7 + $0x4] sm:$0x3] %v89
    %v91 = vld [vmem:[#allocation5 + $0x3] sm:$0x1]
    %v93 = vlaneseq
    %v94 = vshrl.u32 %v93, 7
    %v95 = vsub.s32 0, %v94
    %v96 = vrot.slane %v91, %v95
    %v98 = vmul.f32 %v39, %v96
    %v99 = vld [vmem:[%s2 + $0x3] sm:$0x1]
    %v101 = vlaneseq
    %v102 = vshrl.u32 %v101, 7
    %v103 = vsub.s32 0, %v102
    %v104 = vrot.slane %v99, %v103
    %v106 = vadd.f32 %v98, %v104
    %107 = vst [vmem:[#allocation7 + $0x6] sm:$0x3] %v106
    %v108 = vld [vmem:[#allocation5 + $0x4] sm:$0x1]
    %v110 = vlaneseq
    %v111 = vshrl.u32 %v110, 7
    %v112 = vsub.s32 0, %v111
    %v113 = vrot.slane %v108, %v112
    %v115 = vmul.f32 %v39, %v113
    %v116 = vld [vmem:[%s2 + $0x4] sm:$0x1]
    %v118 = vlaneseq
    %v119 = vshrl.u32 %v118, 7
    %v120 = vsub.s32 0, %v119
    %v121 = vrot.slane %v116, %v120
    %v123 = vadd.f32 %v115, %v121
    %124 = vst [vmem:[#allocation7 + $0x8] sm:$0x3] %v123
    %v125 = vld [vmem:[#allocation5 + $0x5] sm:$0x1]
    %v127 = vlaneseq
    %v128 = vshrl.u32 %v127, 7
    %v129 = vsub.s32 0, %v128
    %v130 = vrot.slane %v125, %v129
    %v132 = vmul.f32 %v39, %v130
    %v133 = vld [vmem:[%s2 + $0x5] sm:$0x1]
    %v135 = vlaneseq
    %v136 = vshrl.u32 %v135, 7
    %v137 = vsub.s32 0, %v136
    %v138 = vrot.slane %v133, %v137
    %v140 = vadd.f32 %v132, %v138
    %141 = vst [vmem:[#allocation7 + $0xa] sm:$0x3] %v140
    // Predicated region
    $region22: #{tpu_custom_call.1} parent=1 // pred_check
      _
    $region23: #{tpu_custom_call.1} parent=1 // pred_check_branch
      %143 = sbr.rel (0) target = $region25
    $region24: #{tpu_custom_call.1} parent=1 // pred_region
      %s145 = ssub.s32 192, 192
      %146 = vsyncadd [#allocation4], %s145
      %s148 = sshll.u32 [#allocation7], 4
      %s149 = int_to_ptr.vmem [resolvable:$true] %s148
      %151 = dma.vmem_to_hbm [thread:$0]  %s149, 192, %s3, [#allocation4]
    $region25: #{tpu_custom_call.1} parent=1 // pred_fallthru
      _
    // Predicated region
    $region26: #{tpu_custom_call.1} parent=1 // pred_check
      _
    $region27: #{tpu_custom_call.1} parent=1 // pred_check_branch
      %153 = sbr.rel (0) target = $region29
    $region28: #{tpu_custom_call.1} parent=1 // pred_region
      %154 = dma.done [#allocation4], 192
    $region29: #{tpu_custom_call.1} parent=1 // pred_fallthru
      _
    %155 = vsyncpa [#allocation3], 1
    %156 = vsyncpa [#allocation6], 1
    %157 = vsyncpa [#allocation4], 1

// kernel: tpu_custom_call.1
$region0: #{tpu_custom_call.1}
  #allocation0 [shape = 'u32[]', space=smem, size = 0x4, offset = 0x4, fixed_abs, tag = 'smem constant byte address 0x4 - core index']
  #allocation1 [shape = 'u32[144,128]{1,0:T(1,128)}', space=vmem, size = 0x12000, scoped, tag = 'internal scratch']
  %s0 = inlined_call_operand.hbm [shape: f32[2,128], index: 0, kind: input, shape index: {}]
  %s1 = inlined_call_operand.hbm [shape: f32[1,768], index: 1, kind: input, shape index: {}]
  %s2 = inlined_call_operand.vmem [shape: f32[1,768], index: 2, kind: input, shape index: {}]
  %s3 = inlined_call_operand.hbm [shape: f32[2,768], index: 3, kind: output, shape index: {}]
  %s4 = sld [smem:[#allocation0]]
  $region30: #{tpu_custom_call.1} parent=0
    _
  %s6 = ssub.s32 1, %s4
  %s7 = scalar_select 0, %s6, %s4
  $region1: #{tpu_custom_call.1} parent=0
    #allocation2 [shape = 'u8[1024]{0}', space=vmem, size = 0x400, scoped, tag = 'input window, operand 0, single buffered']
    #allocation3 [shape = 's32[1]{0}', space=sflag, size = 0x4, scoped, tag = 'scoped memory for tpu_custom_call.1']
    #allocation4 [shape = 's32[1]{0}', space=sflag, size = 0x4, scoped, tag = 'scoped memory for tpu_custom_call.1']
    #allocation5 [shape = 'u8[3072]{0}', space=vmem, size = 0xc00, scoped, tag = 'input window, operand 1, single buffered']
    #allocation6 [shape = 's32[1]{0}', space=sflag, size = 0x4, scoped, tag = 'scoped memory for tpu_custom_call.1']
    #allocation7 [shape = 'u8[6144]{0}', space=vmem, size = 0x1800, scoped, tag = 'output window, operand 0, single buffered']
    %8 = vsyncpa [#allocation3], 0
    %9 = vsyncpa [#allocation6], 0
    %10 = vsyncpa [#allocation4], 0
    // Predicated region
    $region2: #{tpu_custom_call.1} parent=1 // pred_check
      _
    $region3: #{tpu_custom_call.1} parent=1 // pred_check_branch
      %12 = sbr.rel (0) target = $region5
    $region4: #{tpu_custom_call.1} parent=1 // pred_region
      %s14 = ssub.s32 32, 32
      %15 = vsyncadd [#allocation3], %s14
      %s17 = sshll.u32 [#allocation2], 4
      %s18 = int_to_ptr.vmem [resolvable:$true] %s17
      %20 = dma.hbm_to_vmem [thread:$0]  %s0, 32, %s18, [#allocation3]
    $region5: #{tpu_custom_call.1} parent=1 // pred_fallthru
      _
    // Predicated region
    $region6: #{tpu_custom_call.1} parent=1 // pred_check
      _
    $region7: #{tpu_custom_call.1} parent=1 // pred_check_branch
      %22 = sbr.rel (0) target = $region9
    $region8: #{tpu_custom_call.1} parent=1 // pred_region
      %s24 = ssub.s32 96, 96
      %25 = vsyncadd [#allocation6], %s24
      %s27 = sshll.u32 [#allocation5], 4
      %s28 = int_to_ptr.vmem [resolvable:$true] %s27
      %30 = dma.hbm_to_vmem [thread:$0]  %s1, 96, %s28, [#allocation6]
    $region9: #{tpu_custom_call.1} parent=1 // pred_fallthru
      _
    // Predicated region
    $region10: #{tpu_custom_call.1} parent=1 // pred_check
      _
    $region11: #{tpu_custom_call.1} parent=1 // pred_check_branch
      %32 = sbr.rel (0) target = $region13
    $region12: #{tpu_custom_call.1} parent=1 // pred_region
      _
    $region13: #{tpu_custom_call.1} parent=1 // pred_fallthru
      _
    // Predicated region
    $region14: #{tpu_custom_call.1} parent=1 // pred_check
      _
    $region15: #{tpu_custom_call.1} parent=1 // pred_check_branch
      %34 = sbr.rel (0) target = $region17
    $region16: #{tpu_custom_call.1} parent=1 // pred_region
      %35 = dma.done [#allocation3], 32
    $region17: #{tpu_custom_call.1} parent=1 // pred_fallthru
      _
    // Predicated region
    $region18: #{tpu_custom_call.1} parent=1 // pred_check
      _
    $region19: #{tpu_custom_call.1} parent=1 // pred_check_branch
      %37 = sbr.rel (0) target = $region21
    $region20: #{tpu_custom_call.1} parent=1 // pred_region
      %38 = dma.done [#allocation6], 96
    $region21: #{tpu_custom_call.1} parent=1 // pred_fallthru
      _
    %v39 = vld [vmem:[#allocation2] sm:$0x3]
    %v40 = vld [vmem:[#allocation5] sm:$0x1]
    %v42 = vlaneseq
    %v43 = vshrl.u32 %v42, 7
    %v44 = vsub.s32 0, %v43
    %v45 = vrot.slane %v40, %v44
    %v47 = vmul.f32 %v39, %v45
    %v48 = vld [vmem:[%s2] sm:$0x1]
    %v50 = vlaneseq
    %v51 = vshrl.u32 %v50, 7
    %v52 = vsub.s32 0, %v51
    %v53 = vrot.slane %v48, %v52
    %v55 = vadd.f32 %v47, %v53
    %56 = vst [vmem:[#allocation7] sm:$0x3] %v55
    %v57 = vld [vmem:[#allocation5 + $0x1] sm:$0x1]
    %v59 = vlaneseq
    %v60 = vshrl.u32 %v59, 7
    %v61 = vsub.s32 0, %v60
    %v62 = vrot.slane %v57, %v61
    %v64 = vmul.f32 %v39, %v62
    %v65 = vld [vmem:[%s2 + $0x1] sm:$0x1]
    %v67 = vlaneseq
    %v68 = vshrl.u32 %v67, 7
    %v69 = vsub.s32 0, %v68
    %v70 = vrot.slane %v65, %v69
    %v72 = vadd.f32 %v64, %v70
    %73 = vst [vmem:[#allocation7 + $0x2] sm:$0x3] %v72
    %v74 = vld [vmem:[#allocation5 + $0x2] sm:$0x1]
    %v76 = vlaneseq
    %v77 = vshrl.u32 %v76, 7
    %v78 = vsub.s32 0, %v77
    %v79 = vrot.slane %v74, %v78
    %v81 = vmul.f32 %v39, %v79
    %v82 = vld [vmem:[%s2 + $0x2] sm:$0x1]
    %v84 = vlaneseq
    %v85 = vshrl.u32 %v84, 7
    %v86 = vsub.s32 0, %v85
    %v87 = vrot.slane %v82, %v86
    %v89 = vadd.f32 %v81, %v87
    %90 = vst [vmem:[#allocation7 + $0x4] sm:$0x3] %v89
    %v91 = vld [vmem:[#allocation5 + $0x3] sm:$0x1]
    %v93 = vlaneseq
    %v94 = vshrl.u32 %v93, 7
    %v95 = vsub.s32 0, %v94
    %v96 = vrot.slane %v91, %v95
    %v98 = vmul.f32 %v39, %v96
    %v99 = vld [vmem:[%s2 + $0x3] sm:$0x1]
    %v101 = vlaneseq
    %v102 = vshrl.u32 %v101, 7
    %v103 = vsub.s32 0, %v102
    %v104 = vrot.slane %v99, %v103
    %v106 = vadd.f32 %v98, %v104
    %107 = vst [vmem:[#allocation7 + $0x6] sm:$0x3] %v106
    %v108 = vld [vmem:[#allocation5 + $0x4] sm:$0x1]
    %v110 = vlaneseq
    %v111 = vshrl.u32 %v110, 7
    %v112 = vsub.s32 0, %v111
    %v113 = vrot.slane %v108, %v112
    %v115 = vmul.f32 %v39, %v113
    %v116 = vld [vmem:[%s2 + $0x4] sm:$0x1]
    %v118 = vlaneseq
    %v119 = vshrl.u32 %v118, 7
    %v120 = vsub.s32 0, %v119
    %v121 = vrot.slane %v116, %v120
    %v123 = vadd.f32 %v115, %v121
    %124 = vst [vmem:[#allocation7 + $0x8] sm:$0x3] %v123
    %v125 = vld [vmem:[#allocation5 + $0x5] sm:$0x1]
    %v127 = vlaneseq
    %v128 = vshrl.u32 %v127, 7
    %v129 = vsub.s32 0, %v128
    %v130 = vrot.slane %v125, %v129
    %v132 = vmul.f32 %v39, %v130
    %v133 = vld [vmem:[%s2 + $0x5] sm:$0x1]
    %v135 = vlaneseq
    %v136 = vshrl.u32 %v135, 7
    %v137 = vsub.s32 0, %v136
    %v138 = vrot.slane %v133, %v137
    %v140 = vadd.f32 %v132, %v138
    %141 = vst [vmem:[#allocation7 + $0xa] sm:$0x3] %v140
    // Predicated region
    $region22: #{tpu_custom_call.1} parent=1 // pred_check
      _
    $region23: #{tpu_custom_call.1} parent=1 // pred_check_branch
      %143 = sbr.rel (0) target = $region25
    $region24: #{tpu_custom_call.1} parent=1 // pred_region
      %s145 = ssub.s32 192, 192
      %146 = vsyncadd [#allocation4], %s145
      %s148 = sshll.u32 [#allocation7], 4
      %s149 = int_to_ptr.vmem [resolvable:$true] %s148
      %151 = dma.vmem_to_hbm [thread:$0]  %s149, 192, %s3, [#allocation4]
    $region25: #{tpu_custom_call.1} parent=1 // pred_fallthru
      _
    // Predicated region
    $region26: #{tpu_custom_call.1} parent=1 // pred_check
      _
    $region27: #{tpu_custom_call.1} parent=1 // pred_check_branch
      %153 = sbr.rel (0) target = $region29
    $region28: #{tpu_custom_call.1} parent=1 // pred_region
      %154 = dma.done [#allocation4], 192
    $region29: #{tpu_custom_call.1} parent=1 // pred_fallthru
      _
    %155 = vsyncpa [#allocation3], 1
    %156 = vsyncpa [#allocation6], 1
    %157 = vsyncpa [#allocation4], 1

</llo_original>
